<compile_context>
chip_gen: v5e
topology: v5e:2x2
jax: 0.10.0
libtpu: 0.0.40
codegen_flags: <defaults>
</compile_context>

<pallas_src>
import jax
import jax.numpy as jnp
from jax.experimental import pallas as pl
from jax.experimental.pallas import tpu as pltpu

_LANE = 128
_NEG_BIG = -1e30  # softmax mask for padded output lanes


def _round_up(x, m):
    return ((x + m - 1) // m) * m


def scopenet_kernel(x_ref, w1_ref, b1_ref, w2_ref, b2_ref, o_ref):
    # fc1: (TB, S) @ (S, H) on the MXU, f32 accumulate; bias + ReLU on the VPU.
    h = jnp.dot(x_ref[...], w1_ref[...], preferred_element_type=jnp.float32)
    h = jnp.maximum(h + b1_ref[...], 0.0)
    # fc2: (TB, H) @ (H, Pp); feed the MXU in the low-precision compute dtype.
    logits = jnp.dot(h.astype(w2_ref.dtype), w2_ref[...],
                     preferred_element_type=jnp.float32)
    logits = logits + b2_ref[...]  # pad lanes carry -1e30 -> exp() underflows to 0
    # Numerically stable softmax over the last (lane) dim.  Exact f32 divide so the
    # rows sum to 1 within f32 rounding (approx reciprocal was too coarse).
    m = jnp.max(logits, axis=-1, keepdims=True)
    e = jnp.exp(logits - m)
    denom = jnp.sum(e, axis=-1, keepdims=True)
    o_ref[...] = (e / denom).astype(o_ref.dtype)


def scopenet_forward(x, w1, b1, w2, b2, *, block_b=1024, compute_dtype=jnp.bfloat16):
    """x: (B, S) f32; w1: (S, S); b1: (1, S) or (S,); w2: (S, P); b2: (1, P) or (P,).

    Returns softmax(relu(x @ w1 + b1) @ w2 + b2) of shape (B, P), f32.
    """
    B, S = x.shape
    S2, P = w2.shape
    assert w1.shape == (S, S) and S2 == S
    b1 = jnp.reshape(b1, (1, S)).astype(jnp.float32)
    b2 = jnp.reshape(b2, (1, P)).astype(jnp.float32)

    # Lane-dense padded widths (zero columns are harmless for the matmuls; the
    # padded b2 lanes are -1e30 so softmax gives them zero probability).
    H = _round_up(S, _LANE)   # fc1 output / fc2 input width
    Pp = _round_up(P, _LANE)  # fc2 output width

    # Batch tiling: rows aligned to the sublane packing of the compute dtype.
    row_align = 32 // jnp.dtype(compute_dtype).itemsize  # f32->8, bf16->16, int8->32
    B_aligned = _round_up(B, row_align)
    TB = min(_round_up(block_b, row_align), B_aligned)
    Bp = _round_up(B_aligned, TB)
    nb = Bp // TB

    # Pad / cast inputs. x keeps its true feature width (no extra HBM read traffic);
    # weights/biases are tiny, so padding them to 128 lanes is free.
    x_c = x.astype(compute_dtype)
    if Bp != B:
        x_p = jnp.zeros((Bp, S), compute_dtype).at[:B, :].set(x_c)
    else:
        x_p = x_c
    w1_p = jnp.zeros((S, H), compute_dtype).at[:, :S].set(w1.astype(compute_dtype))
    b1_p = jnp.zeros((1, H), jnp.float32).at[:, :S].set(b1)
    w2_p = jnp.zeros((H, Pp), compute_dtype).at[:S, :P].set(w2.astype(compute_dtype))
    b2_p = jnp.full((1, Pp), _NEG_BIG, jnp.float32).at[:, :P].set(b2)

    out = pl.pallas_call(
        scopenet_kernel,
        out_shape=jax.ShapeDtypeStruct((Bp, Pp), jnp.float32),
        grid_spec=pltpu.PrefetchScalarGridSpec(
            num_scalar_prefetch=0,
            grid=(nb,),
            in_specs=[
                pl.BlockSpec((TB, S), lambda i: (i, 0)),   # streamed batch tiles
                pl.BlockSpec((S, H), lambda i: (0, 0)),    # resident weights/biases
                pl.BlockSpec((1, H), lambda i: (0, 0)),
                pl.BlockSpec((H, Pp), lambda i: (0, 0)),
                pl.BlockSpec((1, Pp), lambda i: (0, 0)),
            ],
            out_specs=pl.BlockSpec((TB, Pp), lambda i: (i, 0)),
        ),
        compiler_params=pltpu.CompilerParams(
            dimension_semantics=("parallel",),        # shard batch across TCs on v7x
            vmem_limit_bytes=32 * 1024 * 1024,        # well below every generation's VMEM
        ),
    )(x_p, w1_p, b1_p, w2_p, b2_p)

    return out[:B, :P]


def make_params(key, n_scopes, n_profession):
    """Deterministic synthetic parameters (PyTorch-Linear-like uniform init)."""
    k1, k2, k3, k4 = jax.random.split(key, 4)
    bound1 = 1.0 / (n_scopes ** 0.5)
    w1 = jax.random.uniform(k1, (n_scopes, n_scopes), jnp.float32, -bound1, bound1)
    b1 = jax.random.uniform(k2, (1, n_scopes), jnp.float32, -bound1, bound1)
    bound2 = 1.0 / (n_scopes ** 0.5)
    w2 = jax.random.uniform(k3, (n_scopes, n_profession), jnp.float32, -bound2, bound2)
    b2 = jax.random.uniform(k4, (1, n_profession), jnp.float32, -bound2, bound2)
    return w1, b1, w2, b2


def reference_forward(x, w1, b1, w2, b2, compute_dtype=jnp.bfloat16):
    """Pure-JAX reference mirroring the kernel's bf16-operand / f32-accumulate math."""
    xc = x.astype(compute_dtype)
    h = jnp.dot(xc, w1.astype(compute_dtype), preferred_element_type=jnp.float32)
    h = jnp.maximum(h + b1.reshape(1, -1).astype(jnp.float32), 0.0)
    logits = jnp.dot(h.astype(compute_dtype), w2.astype(compute_dtype),
                     preferred_element_type=jnp.float32)
    logits = logits + b2.reshape(1, -1).astype(jnp.float32)
    return jax.nn.softmax(logits, axis=-1)


if __name__ == "__main__":
    n_scopes, n_profession = 32, 16
    key = jax.random.PRNGKey(0)
    kx, kp, kx2 = jax.random.split(key, 3)
    w1, b1, w2, b2 = make_params(kp, n_scopes, n_profession)

    # Check 1: small batch, single grid step.
    B = 8
    x = jax.random.normal(kx, (B, n_scopes), dtype=jnp.float32)
    out = jax.block_until_ready(scopenet_forward(x, w1, b1, w2, b2))
    ref = reference_forward(x, w1, b1, w2, b2)
    assert out.shape == (B, n_profession)
    assert jnp.allclose(out, ref, atol=2e-3, rtol=2e-3)
    assert jnp.allclose(jnp.sum(out, axis=-1), jnp.ones((B,)), atol=1e-3)

    # Check 2: batch not a multiple of the tile -> exercises padding + multi-step grid.
    B2 = 50
    x2 = jax.random.normal(kx2, (B2, n_scopes), dtype=jnp.float32)
    out2 = jax.block_until_ready(scopenet_forward(x2, w1, b1, w2, b2, block_b=16))
    ref2 = reference_forward(x2, w1, b1, w2, b2)
    assert out2.shape == (B2, n_profession)
    assert jnp.allclose(out2, ref2, atol=2e-3, rtol=2e-3)
    assert jnp.allclose(jnp.sum(out2, axis=-1), jnp.ones((B2,)), atol=1e-3)

    print("KERNEL_OK")
</pallas_src>

<mosaic_0001>
module attributes {stable_mosaic.version = 11 : i64} {
  func.func @scopenet_kernel(%arg0: i32, %arg1: memref<16x32xbf16, #tpu.memory_space<vmem>>, %arg2: memref<32x128xbf16, #tpu.memory_space<vmem>>, %arg3: memref<1x128xf32, #tpu.memory_space<vmem>>, %arg4: memref<128x128xbf16, #tpu.memory_space<vmem>>, %arg5: memref<1x128xf32, #tpu.memory_space<vmem>>, %arg6: memref<16x128xf32, #tpu.memory_space<vmem>>) attributes {dimension_semantics = [#tpu.dimension_semantics<parallel>], iteration_bounds = array<i64: 1>, scalar_prefetch = 0 : i64, scratch_operands = 0 : i64, tpu.core_type = #tpu.core_type<tc>, window_params = [{transform_indices = @transform_0, window_bounds = array<i64: 16, 32>}, {pipeline_mode = #tpu.pipeline_mode<synchronous>, transform_indices = @transform_1, window_bounds = array<i64: 32, 128>}, {pipeline_mode = #tpu.pipeline_mode<synchronous>, transform_indices = @transform_2, window_bounds = array<i64: 1, 128>}, {pipeline_mode = #tpu.pipeline_mode<synchronous>, transform_indices = @transform_3, window_bounds = array<i64: 128, 128>}, {pipeline_mode = #tpu.pipeline_mode<synchronous>, transform_indices = @transform_4, window_bounds = array<i64: 1, 128>}, {transform_indices = @transform_5, window_bounds = array<i64: 16, 128>}]} {
    %c0 = arith.constant 0 : index
    %c0_0 = arith.constant 0 : index
    %0 = vector.load %arg1[%c0, %c0_0] : memref<16x32xbf16, #tpu.memory_space<vmem>>, vector<16x32xbf16>
    %c0_1 = arith.constant 0 : index
    %c0_2 = arith.constant 0 : index
    %1 = vector.load %arg2[%c0_1, %c0_2] : memref<32x128xbf16, #tpu.memory_space<vmem>>, vector<32x128xbf16>
    %cst = arith.constant dense<0.000000e+00> : vector<16x128xf32>
    %2 = tpu.matmul %0, %1, %cst {dimension_numbers = #tpu.dot_dimension_numbers<[1], [0], [0], [1], [0, 0, 1, 1], [], []>} : vector<16x32xbf16>, vector<32x128xbf16>, vector<16x128xf32> -> vector<16x128xf32>
    %c0_3 = arith.constant 0 : index
    %c0_4 = arith.constant 0 : index
    %3 = vector.load %arg3[%c0_3, %c0_4] : memref<1x128xf32, #tpu.memory_space<vmem>>, vector<1x128xf32>
    %4 = vector.broadcast %3 : vector<1x128xf32> to vector<16x128xf32>
    %5 = arith.addf %2, %4 : vector<16x128xf32>
    %cst_5 = arith.constant 0.000000e+00 : f32
    %6 = vector.broadcast %cst_5 : f32 to vector<16x128xf32>
    %7 = arith.maximumf %5, %6 : vector<16x128xf32>
    %8 = arith.truncf %7 : vector<16x128xf32> to vector<16x128xbf16>
    %c0_6 = arith.constant 0 : index
    %c0_7 = arith.constant 0 : index
    %9 = vector.load %arg4[%c0_6, %c0_7] : memref<128x128xbf16, #tpu.memory_space<vmem>>, vector<128x128xbf16>
    %cst_8 = arith.constant dense<0.000000e+00> : vector<16x128xf32>
    %10 = tpu.matmul %8, %9, %cst_8 {dimension_numbers = #tpu.dot_dimension_numbers<[1], [0], [0], [1], [0, 0, 1, 1], [], []>} : vector<16x128xbf16>, vector<128x128xbf16>, vector<16x128xf32> -> vector<16x128xf32>
    %c0_9 = arith.constant 0 : index
    %c0_10 = arith.constant 0 : index
    %11 = vector.load %arg5[%c0_9, %c0_10] : memref<1x128xf32, #tpu.memory_space<vmem>>, vector<1x128xf32>
    %12 = vector.broadcast %11 : vector<1x128xf32> to vector<16x128xf32>
    %13 = arith.addf %10, %12 : vector<16x128xf32>
    %cst_11 = arith.constant dense<0xFF800000> : vector<16xf32>
    %14 = vector.multi_reduction <maximumf>, %13, %cst_11 [1] : vector<16x128xf32> to vector<16xf32>
    %15 = vector.shape_cast %14 : vector<16xf32> to vector<16x1xf32>
    %16 = vector.broadcast %15 : vector<16x1xf32> to vector<16x128xf32>
    %17 = arith.subf %13, %16 : vector<16x128xf32>
    %18 = math.exp %17 : vector<16x128xf32>
    %cst_12 = arith.constant dense<0.000000e+00> : vector<16xf32>
    %19 = vector.multi_reduction <add>, %18, %cst_12 [1] : vector<16x128xf32> to vector<16xf32>
    %20 = vector.shape_cast %19 : vector<16xf32> to vector<16x1xf32>
    %21 = vector.broadcast %20 : vector<16x1xf32> to vector<16x128xf32>
    %22 = arith.divf %18, %21 : vector<16x128xf32>
    %c0_13 = arith.constant 0 : index
    %c0_14 = arith.constant 0 : index
    %23 = vector.load %arg6[%c0_13, %c0_14] : memref<16x128xf32, #tpu.memory_space<vmem>>, vector<16x128xf32>
    tpu.vector_store %arg6[%c0_13, %c0_14], %22 {strides = array<i32>} : memref<16x128xf32, #tpu.memory_space<vmem>>, vector<16x128xf32>,
    return
  }
  func.func @transform_0(%arg0: i32) -> (i32, i32) {
    %c0_i32 = arith.constant 0 : i32
    %c0_i32_0 = arith.constant 0 : i32
    return %arg0, %c0_i32 : i32, i32
  }
  func.func @transform_1(%arg0: i32) -> (i32, i32) {
    %c0_i32 = arith.constant 0 : i32
    %c0_i32_0 = arith.constant 0 : i32
    %c0_i32_1 = arith.constant 0 : i32
    return %c0_i32, %c0_i32_0 : i32, i32
  }
  func.func @transform_2(%arg0: i32) -> (i32, i32) {
    %c0_i32 = arith.constant 0 : i32
    %c0_i32_0 = arith.constant 0 : i32
    %c0_i32_1 = arith.constant 0 : i32
    return %c0_i32, %c0_i32_0 : i32, i32
  }
  func.func @transform_3(%arg0: i32) -> (i32, i32) {
    %c0_i32 = arith.constant 0 : i32
    %c0_i32_0 = arith.constant 0 : i32
    %c0_i32_1 = arith.constant 0 : i32
    return %c0_i32, %c0_i32_0 : i32, i32
  }
  func.func @transform_4(%arg0: i32) -> (i32, i32) {
    %c0_i32 = arith.constant 0 : i32
    %c0_i32_0 = arith.constant 0 : i32
    %c0_i32_1 = arith.constant 0 : i32
    return %c0_i32, %c0_i32_0 : i32, i32
  }
  func.func @transform_5(%arg0: i32) -> (i32, i32) {
    %c0_i32 = arith.constant 0 : i32
    %c0_i32_0 = arith.constant 0 : i32
    return %arg0, %c0_i32 : i32, i32
  }
}

</mosaic_0001>

<llo_original>
// kernel: tpu_custom_call.1
$region0: #{tpu_custom_call.1}
  #allocation0 [shape = 'u32[]', space=smem, size = 0x4, offset = 0x4, fixed_abs, tag = 'smem constant byte address 0x4 - core index']
  #allocation1 [shape = 'u32[72,128]{1,0:T(1,128)}', space=vmem, size = 0x9000, scoped, tag = 'internal scratch']
  %s0 = inlined_call_operand.hbm [shape: bf16[16,32], index: 0, kind: input, shape index: {}]
  %s1 = inlined_call_operand.hbm [shape: bf16[32,128], index: 1, kind: input, shape index: {}]
  %s2 = inlined_call_operand.vmem [shape: f32[1,128], index: 2, kind: input, shape index: {}]
  %s3 = inlined_call_operand.hbm [shape: bf16[128,128], index: 3, kind: input, shape index: {}]
  %s4 = inlined_call_operand.vmem [shape: f32[1,128], index: 4, kind: input, shape index: {}]
  %s5 = inlined_call_operand.hbm [shape: f32[16,128], index: 5, kind: output, shape index: {}]
  %s6 = sld [smem:[#allocation0]]
  $region42: #{tpu_custom_call.1} parent=0
    _
  %s8 = ssub.s32 1, %s6
  %s9 = scalar_select 0, %s8, %s6
  $region1: #{tpu_custom_call.1} parent=0
    #allocation2 [shape = 'u8[4096]{0}', space=vmem, size = 0x1000, scoped, tag = 'input window, operand 0, single buffered']
    #allocation3 [shape = 's32[1]{0}', space=sflag, size = 0x4, scoped, tag = 'scoped memory for tpu_custom_call.1']
    #allocation4 [shape = 's32[1]{0}', space=sflag, size = 0x4, scoped, tag = 'scoped memory for tpu_custom_call.1']
    #allocation5 [shape = 'u8[8192]{0}', space=vmem, size = 0x2000, scoped, tag = 'input window, operand 1, single buffered']
    #allocation6 [shape = 's32[1]{0}', space=sflag, size = 0x4, scoped, tag = 'scoped memory for tpu_custom_call.1']
    #allocation7 [shape = 'u8[32768]{0}', space=vmem, size = 0x8000, scoped, tag = 'input window, operand 3, single buffered']
    #allocation8 [shape = 'u8[8192]{0}', space=vmem, size = 0x2000, scoped, tag = 'output window, operand 0, single buffered']
    %10 = vsyncpa [#allocation3], 0
    %11 = vsyncpa [#allocation6], 0
    %12 = vsyncpa [#allocation4], 0
    // Predicated region
    $region2: #{tpu_custom_call.1} parent=1 // pred_check
      _
    $region3: #{tpu_custom_call.1} parent=1 // pred_check_branch
      %14 = sbr.rel (0) target = $region5
    $region4: #{tpu_custom_call.1} parent=1 // pred_region
      %16 = vsyncadd [#allocation3], 0
      %s17 = sshll.u32 %s0, 4
      %s18 = int_to_ptr.hbm [resolvable:$true] %s17
      %s19 = sshll.u32 [#allocation2], 4
      %s20 = int_to_ptr.vmem [resolvable:$true] %s19
      %25 = dma.hbm_to_vmem [thread:$0]  %s18, 128, %s20, [#allocation3], 64, 64, 4
    $region5: #{tpu_custom_call.1} parent=1 // pred_fallthru
      _
    // Predicated region
    $region6: #{tpu_custom_call.1} parent=1 // pred_check
      _
    $region7: #{tpu_custom_call.1} parent=1 // pred_check_branch
      %27 = sbr.rel (0) target = $region9
    $region8: #{tpu_custom_call.1} parent=1 // pred_region
      %29 = vsyncadd [#allocation6], 0
      %s30 = sshll.u32 %s1, 4
      %s31 = int_to_ptr.hbm [resolvable:$true] %s30
      %s32 = sshll.u32 [#allocation5], 4
      %s33 = int_to_ptr.vmem [resolvable:$true] %s32
      %38 = dma.hbm_to_vmem [thread:$0]  %s31, 256, %s33, [#allocation6], 64, 64, 4
    $region9: #{tpu_custom_call.1} parent=1 // pred_fallthru
      _
    // Predicated region
    $region10: #{tpu_custom_call.1} parent=1 // pred_check
      _
    $region11: #{tpu_custom_call.1} parent=1 // pred_check_branch
      %40 = sbr.rel (0) target = $region13
    $region12: #{tpu_custom_call.1} parent=1 // pred_region
      _
    $region13: #{tpu_custom_call.1} parent=1 // pred_fallthru
      _
    // Predicated region
    $region14: #{tpu_custom_call.1} parent=1 // pred_check
      _
    $region15: #{tpu_custom_call.1} parent=1 // pred_check_branch
      %42 = sbr.rel (0) target = $region17
    $region16: #{tpu_custom_call.1} parent=1 // pred_region
      %44 = vsyncadd [#allocation6], 0
      %s45 = sshll.u32 %s3, 4
      %s46 = int_to_ptr.hbm [resolvable:$true] %s45
      %s47 = sshll.u32 [#allocation7], 4
      %s48 = int_to_ptr.vmem [resolvable:$true] %s47
      %53 = dma.hbm_to_vmem [thread:$0]  %s46, 1024, %s48, [#allocation6], 64, 64, 4
    $region17: #{tpu_custom_call.1} parent=1 // pred_fallthru
      _
    // Predicated region
    $region18: #{tpu_custom_call.1} parent=1 // pred_check
      _
    $region19: #{tpu_custom_call.1} parent=1 // pred_check_branch
      %55 = sbr.rel (0) target = $region21
    $region20: #{tpu_custom_call.1} parent=1 // pred_region
      _
    $region21: #{tpu_custom_call.1} parent=1 // pred_fallthru
      _
    // Predicated region
    $region22: #{tpu_custom_call.1} parent=1 // pred_check
      _
    $region23: #{tpu_custom_call.1} parent=1 // pred_check_branch
      %57 = sbr.rel (0) target = $region25
    $region24: #{tpu_custom_call.1} parent=1 // pred_region
      %59 = dma.done [#allocation3], 128
    $region25: #{tpu_custom_call.1} parent=1 // pred_fallthru
      _
    // Predicated region
    $region26: #{tpu_custom_call.1} parent=1 // pred_check
      _
    $region27: #{tpu_custom_call.1} parent=1 // pred_check_branch
      %61 = sbr.rel (0) target = $region29
    $region28: #{tpu_custom_call.1} parent=1 // pred_region
      %63 = dma.done [#allocation6], 256
    $region29: #{tpu_custom_call.1} parent=1 // pred_fallthru
      _
    // Predicated region
    $region30: #{tpu_custom_call.1} parent=1 // pred_check
      _
    $region31: #{tpu_custom_call.1} parent=1 // pred_check_branch
      %65 = sbr.rel (0) target = $region33
    $region32: #{tpu_custom_call.1} parent=1 // pred_region
      %67 = dma.done [#allocation6], 1024
    $region33: #{tpu_custom_call.1} parent=1 // pred_fallthru
      _
    %v69 = vld [vmem:[#allocation2] sm:$0xf]
    %v70 = vld [vmem:[#allocation2 + $0x4] sm:$0xf]
    %v71 = vld [vmem:[#allocation5] sm:$0xf]
    %v72 = vld [vmem:[#allocation5 + $0x4] sm:$0xf]
    %v73 = vld [vmem:[#allocation5 + $0x8] sm:$0xf]
    %v74 = vld [vmem:[#allocation5 + $0xc] sm:$0xf]
    %v75 = vld [vmem:[%s2] sm:$0x1]
    %v77 = vperm.slane %v75, 0
    %v81 = vunpack.c.l.b16 %v69
    %v82 = vunpack.c.l.b16 %v70
    %v83 = vpack.c.b16 %v82, %v81
    %v88 = vunpack.c.l.b16 %v71
    %v89 = vunpack.c.l.b16 %v72
    %v90 = vunpack.c.l.b16 %v73
    %v91 = vunpack.c.l.b16 %v74
    %v92 = vpack.c.b16 %v89, %v88
    %v93 = vpack.c.b16 %v91, %v90
    %vm96 = vcmask 261120
    %v98 = vsel %vm96, %v83, 0
    %100 = vmatpush.bf16.msra.mxu0 0
    %101 = vmatpush.bf16.msra.mxu0 0
    %102 = vmatpush.bf16.msra.mxu0 0
    %103 = vmatpush.bf16.msra.mxu0 0
    %104 = vmatpush.bf16.msra.mxu0 0
    %105 = vmatpush.bf16.msra.mxu0 0
    %106 = vmatpush.bf16.msra.mxu0 %v93
    %107 = vmatpush.bf16.msra.mxu0 %v92
    %108 = vmatmul.bf16.gmra.mxu0 %v98
    %v109 = vpop.f32.mrf.mxu0
    %v110 = vadd.f32 %v77, %v109
    %v111 = vpop.f32.mrf.mxu0
    %v112 = vadd.f32 %v77, %v111
    %113 = vdwg.mxu0
    %v114 = vmax.f32 %v110, 0.0
    %v115 = vmax.f32 %v112, 0.0
    %v116 = vpack.c.bf16 %v115, %v114
    %v117 = vld [vmem:[#allocation7] sm:$0xf]
    %v118 = vld [vmem:[#allocation7 + $0x4] sm:$0xf]
    %v119 = vld [vmem:[#allocation7 + $0x8] sm:$0xf]
    %v120 = vld [vmem:[#allocation7 + $0xc] sm:$0xf]
    %v121 = vld [vmem:[#allocation7 + $0x10] sm:$0xf]
    %v122 = vld [vmem:[#allocation7 + $0x14] sm:$0xf]
    %v123 = vld [vmem:[#allocation7 + $0x18] sm:$0xf]
    %v124 = vld [vmem:[#allocation7 + $0x1c] sm:$0xf]
    %v125 = vld [vmem:[#allocation7 + $0x20] sm:$0xf]
    %v126 = vld [vmem:[#allocation7 + $0x24] sm:$0xf]
    %v127 = vld [vmem:[#allocation7 + $0x28] sm:$0xf]
    %v128 = vld [vmem:[#allocation7 + $0x2c] sm:$0xf]
    %v129 = vld [vmem:[#allocation7 + $0x30] sm:$0xf]
    %v130 = vld [vmem:[#allocation7 + $0x34] sm:$0xf]
    %v131 = vld [vmem:[#allocation7 + $0x38] sm:$0xf]
    %v132 = vld [vmem:[#allocation7 + $0x3c] sm:$0xf]
    %v133 = vld [vmem:[%s4] sm:$0x1]
    %v135 = vperm.slane %v133, 0
    %v153 = vunpack.c.l.b16 %v117
    %v154 = vunpack.c.l.b16 %v118
    %v155 = vunpack.c.l.b16 %v119
    %v156 = vunpack.c.l.b16 %v120
    %v157 = vunpack.c.l.b16 %v121
    %v158 = vunpack.c.l.b16 %v122
    %v159 = vunpack.c.l.b16 %v123
    %v160 = vunpack.c.l.b16 %v124
    %v161 = vunpack.c.l.b16 %v125
    %v162 = vunpack.c.l.b16 %v126
    %v163 = vunpack.c.l.b16 %v127
    %v164 = vunpack.c.l.b16 %v128
    %v165 = vunpack.c.l.b16 %v129
    %v166 = vunpack.c.l.b16 %v130
    %v167 = vunpack.c.l.b16 %v131
    %v168 = vunpack.c.l.b16 %v132
    %v169 = vpack.c.b16 %v154, %v153
    %v170 = vpack.c.b16 %v156, %v155
    %v171 = vpack.c.b16 %v158, %v157
    %v172 = vpack.c.b16 %v160, %v159
    %v173 = vpack.c.b16 %v162, %v161
    %v174 = vpack.c.b16 %v164, %v163
    %v175 = vpack.c.b16 %v166, %v165
    %v176 = vpack.c.b16 %v168, %v167
    %185 = vmatpush.bf16.msra.mxu0 %v176
    %186 = vmatpush.bf16.msra.mxu0 %v175
    %187 = vmatpush.bf16.msra.mxu0 %v174
    %188 = vmatpush.bf16.msra.mxu0 %v173
    %189 = vmatpush.bf16.msra.mxu0 %v172
    %190 = vmatpush.bf16.msra.mxu0 %v171
    %191 = vmatpush.bf16.msra.mxu0 %v170
    %192 = vmatpush.bf16.msra.mxu0 %v169
    %193 = vmatmul.bf16.gmra.mxu0 %v116
    %v194 = vpop.f32.mrf.mxu0
    %v195 = vadd.f32 %v135, %v194
    %v196 = vpop.f32.mrf.mxu0
    %v197 = vadd.f32 %v135, %v196
    %198 = vdwg.mxu0
    %199 = vmax.xlane.f32.xlu0 %v195
    %v200 = vpop.xlane.xlu0 %199
    %201 = vmax.xlane.f32.xlu0 %v197
    %v202 = vpop.xlane.xlu0 %201
    %v203 = vsub.f32 %v195, %v200
    %v204 = vsub.f32 %v197, %v202
    %v205 = vmul.f32 %v203, 1.442695
    %v206 = vpow.pop %v205
    %v207 = vmul.f32 %v204, 1.442695
    %v208 = vpow.pop %v207
    %209 = vadd.xlane.f32.xlu0 %v206
    %v210 = vpop.xlane.xlu0 %209
    %211 = vadd.xlane.f32.xlu0 %v208
    %v212 = vpop.xlane.xlu0 %211
    %v213 = vrcp.pop %v210
    %v214 = vmul.f32 %v210, %v213
    %v215 = vsub.f32 1.0, %v214
    %v216 = vmul.f32 %v213, %v215
    %v217 = vadd.f32 %v213, %v216
    %vm218 = vweird.f32 %v210
    %vm219 = vweird.f32 %v213
    %vm220 = vmor %vm218, %vm219
    %v221 = vsel %vm220, %v213, %v217
    %v222 = vand.u32 2147483647, %v210
    %vm223 = vcmp.eq.f32.partialorder %v222, 8.507059e+37
    %v224 = vand.u32 %v210, 2147483648
    %v225 = vor.u32 1.1754944e-38, %v224
    %v226 = vsel %vm223, %v225, %v221
    %v227 = vmul.f32 %v206, %v226
    %v228 = vrcp.pop %v212
    %v229 = vmul.f32 %v212, %v228
    %v230 = vsub.f32 1.0, %v229
    %v231 = vmul.f32 %v228, %v230
    %v232 = vadd.f32 %v228, %v231
    %vm233 = vweird.f32 %v212
    %vm234 = vweird.f32 %v228
    %vm235 = vmor %vm233, %vm234
    %v236 = vsel %vm235, %v228, %v232
    %v237 = vand.u32 2147483647, %v212
    %vm238 = vcmp.eq.f32.partialorder %v237, 8.507059e+37
    %v239 = vand.u32 %v212, 2147483648
    %v240 = vor.u32 1.1754944e-38, %v239
    %v241 = vsel %vm238, %v240, %v236
    %v242 = vmul.f32 %v208, %v241
    %243 = vst [vmem:[#allocation8] sm:$0xff] %v227
    %244 = vst [vmem:[#allocation8 + $0x8] sm:$0xff] %v242
    // Predicated region
    $region34: #{tpu_custom_call.1} parent=1 // pred_check
      _
    $region35: #{tpu_custom_call.1} parent=1 // pred_check_branch
      %246 = sbr.rel (0) target = $region37
    $region36: #{tpu_custom_call.1} parent=1 // pred_region
      %248 = vsyncadd [#allocation4], 0
      %s249 = sshll.u32 [#allocation8], 4
      %s250 = int_to_ptr.vmem [resolvable:$true] %s249
      %s251 = sshll.u32 %s5, 4
      %s252 = int_to_ptr.hbm [resolvable:$true] %s251
      %257 = dma.vmem_to_hbm [thread:$0]  %s250, 256, %s252, [#allocation4], 128, 128, 8
    $region37: #{tpu_custom_call.1} parent=1 // pred_fallthru
      _
    // Predicated region
    $region38: #{tpu_custom_call.1} parent=1 // pred_check
      _
    $region39: #{tpu_custom_call.1} parent=1 // pred_check_branch
      %259 = sbr.rel (0) target = $region41
    $region40: #{tpu_custom_call.1} parent=1 // pred_region
      %261 = dma.done [#allocation4], 256
    $region41: #{tpu_custom_call.1} parent=1 // pred_fallthru
      _
    %262 = vsyncpa [#allocation3], 1
    %263 = vsyncpa [#allocation6], 1
    %264 = vsyncpa [#allocation4], 1

</llo_original>
